<compile_context>
chip_gen: v7x
topology: tpu7x:2x2x1
jax: 0.10.0
libtpu: 0.0.40
codegen_flags: <defaults>
</compile_context>

<pallas_src>
import math

import jax
import jax.numpy as jnp
from jax.experimental import pallas as pl
from jax.experimental.pallas import tpu as pltpu

SCOPE = 512.0


def _output_head_kernel(x_ref, w_ref, b_ref, scale_ref, offset_ref,
                        score_ref, geo_ref):
    # x_ref: (32, T)   w_ref: (6, 32)   b/scale/offset: (6, 1)
    x = x_ref[...]
    # Fused 1x1 convs: one small-M MXU matmul, f32 accumulation.
    y = jnp.dot(w_ref[...], x, preferred_element_type=jnp.float32) + b_ref[...]
    # Per-row post-scaling folds all three heads:
    #   row 0   : score = sigmoid(y)                    (scale=1,   offset=0)
    #   rows 1-4: loc   = sigmoid(y) * 512              (scale=512, offset=0)
    #   row 5   : angle = (sigmoid(y) - 0.5) * pi       (scale=pi,  offset=-pi/2)
    z = jax.nn.sigmoid(y) * scale_ref[...] + offset_ref[...]        # (6, T)
    score_ref[...] = z[0:1, :]   # (1, T) lane-dense store
    geo_ref[...] = z[1:6, :]     # (5, T) lane-dense store


def _pick_tile(hw: int) -> int:
    """Largest divisor of hw that is a multiple of 128 and <= 8192 lanes.

    A (32, 8192) f32 input tile is 1 MiB (2 MiB double-buffered) -- comfortably
    inside the scoped VMEM budget while amortizing the ~0.35us/step overhead.
    Falls back to the full extent when hw is not a multiple of 128 (always legal).
    """
    if hw % 128 != 0:
        return hw
    t = 128
    while t * 2 <= min(hw, 8192) and hw % (t * 2) == 0:
        t *= 2
    return t


def output_head(x_nchw, w, b):
    """x_nchw: (N, 32, H, W) f32, w: (6, 32), b: (6,).
    Returns (score (N,1,H,W), geo (N,5,H,W))."""
    N, C, H, W = x_nchw.shape
    assert C == 32, "output head expects 32 input channels"
    HW = H * W
    T = _pick_tile(HW)
    n_t = HW // T

    x3 = x_nchw.reshape(N, C, HW)          # free reshape, channel-major preserved
    b2 = b.reshape(6, 1).astype(jnp.float32)
    scale = jnp.array([1.0, SCOPE, SCOPE, SCOPE, SCOPE, math.pi],
                      jnp.float32).reshape(6, 1)
    offset = jnp.array([0.0, 0.0, 0.0, 0.0, 0.0, -math.pi / 2.0],
                       jnp.float32).reshape(6, 1)

    cost = pl.CostEstimate(
        flops=2 * N * HW * C * 6,
        transcendentals=N * HW * 6,
        bytes_accessed=4 * (N * C * HW + N * 6 * HW + 6 * C + 3 * 6),
    )

    score3, geo3 = pl.pallas_call(
        _output_head_kernel,
        out_shape=(
            jax.ShapeDtypeStruct((N, 1, HW), jnp.float32),
            jax.ShapeDtypeStruct((N, 5, HW), jnp.float32),
        ),
        grid_spec=pltpu.PrefetchScalarGridSpec(
            num_scalar_prefetch=0,
            grid=(N, n_t),
            in_specs=[
                pl.BlockSpec((None, C, T), lambda n, t: (n, 0, t)),  # activation tile
                pl.BlockSpec((6, C), lambda n, t: (0, 0)),           # fused weights (resident)
                pl.BlockSpec((6, 1), lambda n, t: (0, 0)),           # bias
                pl.BlockSpec((6, 1), lambda n, t: (0, 0)),           # per-head scale
                pl.BlockSpec((6, 1), lambda n, t: (0, 0)),           # per-head offset
            ],
            out_specs=[
                pl.BlockSpec((None, 1, T), lambda n, t: (n, 0, t)),
                pl.BlockSpec((None, 5, T), lambda n, t: (n, 0, t)),
            ],
        ),
        compiler_params=pltpu.CompilerParams(
            dimension_semantics=("parallel", "parallel"),
        ),
        cost_estimate=cost,
    )(x3, w, b2, scale, offset)

    return score3.reshape(N, 1, H, W), geo3.reshape(N, 5, H, W)


def init_params(key):
    """Deterministic kaiming_normal_(mode='fan_out', nonlinearity='relu') init.

    For a 1x1 conv with out_channels=c: fan_out = c, std = sqrt(2 / c).
    Biases are zero.  Weights are stored as (Cout, Cin) rows and concatenated into a
    single (6, 32) matrix: [conv1/score (1 row), conv2/loc (4 rows), conv3/angle (1 row)].
    """
    k1, k2, k3 = jax.random.split(key, 3)
    cin = 32
    w1 = jax.random.normal(k1, (1, cin), jnp.float32) * jnp.sqrt(2.0 / 1.0)
    w2 = jax.random.normal(k2, (4, cin), jnp.float32) * jnp.sqrt(2.0 / 4.0)
    w3 = jax.random.normal(k3, (1, cin), jnp.float32) * jnp.sqrt(2.0 / 1.0)
    w = jnp.concatenate([w1, w2, w3], axis=0)   # (6, 32)
    b = jnp.zeros((6,), jnp.float32)
    return w, b


def _reference(x_nchw, w, b):
    """Pure-JAX reference of the PyTorch forward (1x1 conv == channel matmul)."""
    y = jnp.einsum("oc,nchw->nohw", w, x_nchw) + b.reshape(1, 6, 1, 1)
    s = jax.nn.sigmoid(y)
    score = s[:, 0:1]
    loc = s[:, 1:5] * SCOPE
    angle = (s[:, 5:6] - 0.5) * math.pi
    geo = jnp.concatenate([loc, angle], axis=1)
    return score, geo


if __name__ == "__main__":
    key = jax.random.PRNGKey(0)
    kx, kp = jax.random.split(key)

    # Small shapes consistent with the module: Cin must be 32.
    N, C, H, W = 2, 32, 16, 16
    x = jax.random.normal(kx, (N, C, H, W), jnp.float32)
    w, b = init_params(kp)

    score, geo = jax.jit(output_head)(x, w, b)
    jax.block_until_ready((score, geo))

    ref_score, ref_geo = _reference(x, w, b)
    assert score.shape == (N, 1, H, W)
    assert geo.shape == (N, 5, H, W)
    assert jnp.allclose(score, ref_score, atol=1e-5, rtol=1e-5)
    assert jnp.allclose(geo, ref_geo, atol=1e-3, rtol=1e-5)

    print("KERNEL_OK")
</pallas_src>

<mosaic_0001>
module attributes {stable_mosaic.version = 11 : i64} {
  func.func @_output_head_kernel(%arg0: i32, %arg1: i32, %arg2: memref<1x32x256xf32, #tpu.memory_space<vmem>>, %arg3: memref<6x32xf32, #tpu.memory_space<vmem>>, %arg4: memref<6x1xf32, #tpu.memory_space<vmem>>, %arg5: memref<6x1xf32, #tpu.memory_space<vmem>>, %arg6: memref<6x1xf32, #tpu.memory_space<vmem>>, %arg7: memref<1x1x256xf32, #tpu.memory_space<vmem>>, %arg8: memref<1x5x256xf32, #tpu.memory_space<vmem>>) attributes {dimension_semantics = [#tpu.dimension_semantics<parallel>, #tpu.dimension_semantics<parallel>], iteration_bounds = array<i64: 2, 1>, scalar_prefetch = 0 : i64, scratch_operands = 0 : i64, tpu.core_type = #tpu.core_type<tc>, window_params = [{transform_indices = @transform_0, window_bounds = array<i64: 1, 32, 256>}, {pipeline_mode = #tpu.pipeline_mode<synchronous>, transform_indices = @transform_1, window_bounds = array<i64: 6, 32>}, {pipeline_mode = #tpu.pipeline_mode<synchronous>, transform_indices = @transform_2, window_bounds = array<i64: 6, 1>}, {pipeline_mode = #tpu.pipeline_mode<synchronous>, transform_indices = @transform_3, window_bounds = array<i64: 6, 1>}, {pipeline_mode = #tpu.pipeline_mode<synchronous>, transform_indices = @transform_4, window_bounds = array<i64: 6, 1>}, {transform_indices = @transform_5, window_bounds = array<i64: 1, 1, 256>}, {transform_indices = @transform_6, window_bounds = array<i64: 1, 5, 256>}]} {
    %c0 = arith.constant 0 : index
    %c0_0 = arith.constant 0 : index
    %c0_1 = arith.constant 0 : index
    %0 = vector.load %arg2[%c0, %c0_0, %c0_1] : memref<1x32x256xf32, #tpu.memory_space<vmem>>, vector<1x32x256xf32>
    %1 = vector.shape_cast %0 : vector<1x32x256xf32> to vector<32x256xf32>
    %c0_2 = arith.constant 0 : index
    %c0_3 = arith.constant 0 : index
    %2 = vector.load %arg3[%c0_2, %c0_3] : memref<6x32xf32, #tpu.memory_space<vmem>>, vector<6x32xf32>
    %cst = arith.constant dense<0.000000e+00> : vector<6x256xf32>
    %3 = tpu.matmul %2, %1, %cst {dimension_numbers = #tpu.dot_dimension_numbers<[1], [0], [0], [1], [0, 0, 1, 1], [], []>} : vector<6x32xf32>, vector<32x256xf32>, vector<6x256xf32> -> vector<6x256xf32>
    %c0_4 = arith.constant 0 : index
    %c0_5 = arith.constant 0 : index
    %4 = vector.load %arg4[%c0_4, %c0_5] : memref<6x1xf32, #tpu.memory_space<vmem>>, vector<6x1xf32>
    %5 = vector.broadcast %4 : vector<6x1xf32> to vector<6x256xf32>
    %6 = arith.addf %3, %5 : vector<6x256xf32>
    %7 = arith.negf %6 : vector<6x256xf32>
    %8 = math.exp %7 : vector<6x256xf32>
    %cst_6 = arith.constant 1.000000e+00 : f32
    %9 = vector.broadcast %cst_6 : f32 to vector<6x256xf32>
    %10 = arith.addf %9, %8 : vector<6x256xf32>
    %11 = arith.divf %9, %10 : vector<6x256xf32>
    %c0_7 = arith.constant 0 : index
    %c0_8 = arith.constant 0 : index
    %12 = vector.load %arg5[%c0_7, %c0_8] : memref<6x1xf32, #tpu.memory_space<vmem>>, vector<6x1xf32>
    %13 = vector.broadcast %12 : vector<6x1xf32> to vector<6x256xf32>
    %14 = arith.mulf %11, %13 : vector<6x256xf32>
    %c0_9 = arith.constant 0 : index
    %c0_10 = arith.constant 0 : index
    %15 = vector.load %arg6[%c0_9, %c0_10] : memref<6x1xf32, #tpu.memory_space<vmem>>, vector<6x1xf32>
    %16 = vector.broadcast %15 : vector<6x1xf32> to vector<6x256xf32>
    %17 = arith.addf %14, %16 : vector<6x256xf32>
    %18 = vector.extract_strided_slice %17 {offsets = [0, 0], sizes = [1, 256], strides = [1, 1]} : vector<6x256xf32> to vector<1x256xf32>
    %c0_11 = arith.constant 0 : index
    %c0_12 = arith.constant 0 : index
    %c0_13 = arith.constant 0 : index
    %19 = vector.load %arg7[%c0_11, %c0_12, %c0_13] : memref<1x1x256xf32, #tpu.memory_space<vmem>>, vector<1x1x256xf32>
    %20 = vector.shape_cast %19 : vector<1x1x256xf32> to vector<1x256xf32>
    %21 = vector.shape_cast %18 : vector<1x256xf32> to vector<1x1x256xf32>
    tpu.vector_store %arg7[%c0_11, %c0_12, %c0_13], %21 {strides = array<i32>} : memref<1x1x256xf32, #tpu.memory_space<vmem>>, vector<1x1x256xf32>,
    %22 = vector.extract_strided_slice %17 {offsets = [1, 0], sizes = [5, 256], strides = [1, 1]} : vector<6x256xf32> to vector<5x256xf32>
    %c0_14 = arith.constant 0 : index
    %c0_15 = arith.constant 0 : index
    %c0_16 = arith.constant 0 : index
    %23 = vector.load %arg8[%c0_14, %c0_15, %c0_16] : memref<1x5x256xf32, #tpu.memory_space<vmem>>, vector<1x5x256xf32>
    %24 = vector.shape_cast %23 : vector<1x5x256xf32> to vector<5x256xf32>
    %25 = vector.shape_cast %22 : vector<5x256xf32> to vector<1x5x256xf32>
    tpu.vector_store %arg8[%c0_14, %c0_15, %c0_16], %25 {strides = array<i32>} : memref<1x5x256xf32, #tpu.memory_space<vmem>>, vector<1x5x256xf32>,
    return
  }
  func.func @transform_0(%arg0: i32, %arg1: i32) -> (i32, i32, i32) {
    %c0_i32 = arith.constant 0 : i32
    %c0_i32_0 = arith.constant 0 : i32
    return %arg0, %c0_i32, %arg1 : i32, i32, i32
  }
  func.func @transform_1(%arg0: i32, %arg1: i32) -> (i32, i32) {
    %c0_i32 = arith.constant 0 : i32
    %c0_i32_0 = arith.constant 0 : i32
    %c0_i32_1 = arith.constant 0 : i32
    return %c0_i32, %c0_i32_0 : i32, i32
  }
  func.func @transform_2(%arg0: i32, %arg1: i32) -> (i32, i32) {
    %c0_i32 = arith.constant 0 : i32
    %c0_i32_0 = arith.constant 0 : i32
    %c0_i32_1 = arith.constant 0 : i32
    return %c0_i32, %c0_i32_0 : i32, i32
  }
  func.func @transform_3(%arg0: i32, %arg1: i32) -> (i32, i32) {
    %c0_i32 = arith.constant 0 : i32
    %c0_i32_0 = arith.constant 0 : i32
    %c0_i32_1 = arith.constant 0 : i32
    return %c0_i32, %c0_i32_0 : i32, i32
  }
  func.func @transform_4(%arg0: i32, %arg1: i32) -> (i32, i32) {
    %c0_i32 = arith.constant 0 : i32
    %c0_i32_0 = arith.constant 0 : i32
    %c0_i32_1 = arith.constant 0 : i32
    return %c0_i32, %c0_i32_0 : i32, i32
  }
  func.func @transform_5(%arg0: i32, %arg1: i32) -> (i32, i32, i32) {
    %c0_i32 = arith.constant 0 : i32
    %c0_i32_0 = arith.constant 0 : i32
    return %arg0, %c0_i32, %arg1 : i32, i32, i32
  }
  func.func @transform_6(%arg0: i32, %arg1: i32) -> (i32, i32, i32) {
    %c0_i32 = arith.constant 0 : i32
    %c0_i32_0 = arith.constant 0 : i32
    return %arg0, %c0_i32, %arg1 : i32, i32, i32
  }
}

</mosaic_0001>

<llo_original>
// kernel: output_head.1
$region0: #{output_head.1}
  #allocation0 [shape = 'u32[]', space=smem, size = 0x4, offset = 0x4, fixed_abs, tag = 'smem constant byte address 0x4 - core index']
  #allocation1 [shape = 'u32[144,128]{1,0:T(1,128)}', space=vmem, size = 0x12000, scoped, tag = 'internal scratch']
  %s0 = inlined_call_operand.vmem [shape: f32[2,32,256], index: 0, kind: input, shape index: {}]
  %s1 = inlined_call_operand.vmem [shape: f32[6,32], index: 1, kind: input, shape index: {}]
  %s2 = inlined_call_operand.vmem [shape: f32[6,1], index: 2, kind: input, shape index: {}]
  %s3 = inlined_call_operand.vmem [shape: f32[6,1], index: 3, kind: input, shape index: {}]
  %s4 = inlined_call_operand.vmem [shape: f32[6,1], index: 4, kind: input, shape index: {}]
  %s5 = inlined_call_operand.vmem [shape: f32[2,1,256], index: 5, kind: output, shape index: {0}]
  %s6 = inlined_call_operand.vmem [shape: f32[2,5,256], index: 6, kind: output, shape index: {1}]
  %7 = xla_tuple %s5, %s6
  %s8 = sld [smem:[#allocation0]]
  $region61: #{output_head.1} parent=0
    _
  %s10 = ssub.s32 1, %s8
  %s11 = scalar_select 0, %s10, %s8
  loop: start=0, step=1, limit=4
  $region2: #{output_head.1} parent=0 // loop_pre_header
    _
  $region3: #{output_head.1} parent=0 // loop_header
    %s13 = sphi 0, %s17
    %p14 = scmp.ge.s32.totalorder %s13, 4
    %s20 = sphi 0, %s32
    %s21 = sphi 0, %s28
    %s22 = sphi 0, %s20
    %s23 = sphi 0, %s21
    %s24 = sphi 0, %s22
    %s25 = sphi 0, %s23
    %s37 = sphi 0, %s39
    %s40 = sphi 0, %s37
    %s41 = sphi 0, %s40
    %s57 = sphi 0, %s41
    %s61 = sphi 0, %s61
    %s63 = sphi 0, %s61
    %s64 = sphi 0, %s63
    %s78 = sphi 0, %s64
    %s82 = sphi 0, %s82
    %s84 = sphi 0, %s82
    %s85 = sphi 0, %s84
    %s99 = sphi 0, %s85
    %s103 = sphi 0, %s103
    %s105 = sphi 0, %s103
    %s106 = sphi 0, %s105
    %s120 = sphi 0, %s106
    %s124 = sphi 0, %s124
    %s126 = sphi 0, %s124
    %s127 = sphi 0, %s126
    %s141 = sphi 0, %s127
    %s149 = sphi 0, %s151
    %s152 = sphi 0, %s149
    %s153 = sphi 0, %s152
    %s169 = sphi 0, %s153
    %s177 = sphi 0, %s179
    %s180 = sphi 0, %s177
    %s181 = sphi 0, %s180
    %s197 = sphi 0, %s181
  $region4: #{output_head.1} parent=0 // loop_header_branch
    %16 = sbr.rel (%p14) target = $region8
  $region5: #{output_head.1} parent=0 // loop_body
    %s18 = ssub.s32 %s13, 1
    %s19 = ssub.s32 %s13, 2
    %s26 = sadd.s32 1, %s21
    %p27 = scmp.ge.s32.totalorder %s26, 1
    %s28 = scalar_select %p27, 0, %s26
    %s29 = sadd.s32 1, %s20
    %s30 = scalar_select %p27, %s29, %s20
    %p31 = scmp.ge.s32.totalorder %s30, 2
    %s32 = scalar_select %p31, 0, %s30
    %s33 = ssub.s32 %s20, %s32
    %s34 = ssub.s32 %s21, %s28
    %s35 = sor.u32 %s33, %s34
    %p36 = scmp.eq.s32.totalorder %s35, 0
    %s38 = sadd.s32 %s37, 1
    %s39 = scalar_select %p36, %s37, %s38
    %p42 = pneg %p36
    %p43 = scmp.eq.s32.totalorder %s13, 1
    %p44 = por %p42, %p43
    %p45 = scmp.ne.s32.totalorder %s37, %s40
    %p46 = scmp.eq.s32.totalorder %s13, 0
    %p47 = por %p45, %p46
    %p48 = scmp.ne.s32.totalorder %s37, %s40
    %p49 = scmp.eq.s32.totalorder %s18, 1
    %p50 = por %p48, %p49
    %p51 = scmp.ne.s32.totalorder %s40, %s41
    %p52 = scmp.eq.s32.totalorder %s18, 0
    %p53 = por %p51, %p52
    %p54 = scmp.ne.s32.totalorder %s40, %s41
    %p55 = scmp.eq.s32.totalorder %s19, 1
    %p56 = por %p54, %p55
    %p58 = scmp.ne.s32.totalorder %s41, %s57
    %p59 = scmp.eq.s32.totalorder %s19, 0
    %p60 = por %p58, %p59
    %s62 = sadd.s32 %s61, 1
    %p65 = scmp.eq.s32.totalorder %s13, 1
    %p66 = scmp.ne.s32.totalorder %s61, %s63
    %p67 = scmp.eq.s32.totalorder %s13, 0
    %p68 = por %p66, %p67
    %p69 = scmp.ne.s32.totalorder %s61, %s63
    %p70 = scmp.eq.s32.totalorder %s18, 1
    %p71 = por %p69, %p70
    %p72 = scmp.ne.s32.totalorder %s63, %s64
    %p73 = scmp.eq.s32.totalorder %s18, 0
    %p74 = por %p72, %p73
    %p75 = scmp.ne.s32.totalorder %s63, %s64
    %p76 = scmp.eq.s32.totalorder %s19, 1
    %p77 = por %p75, %p76
    %p79 = scmp.ne.s32.totalorder %s64, %s78
    %p80 = scmp.eq.s32.totalorder %s19, 0
    %p81 = por %p79, %p80
    %s83 = sadd.s32 %s82, 1
    %p86 = scmp.eq.s32.totalorder %s13, 1
    %p87 = scmp.ne.s32.totalorder %s82, %s84
    %p88 = scmp.eq.s32.totalorder %s13, 0
    %p89 = por %p87, %p88
    %p90 = scmp.ne.s32.totalorder %s82, %s84
    %p91 = scmp.eq.s32.totalorder %s18, 1
    %p92 = por %p90, %p91
    %p93 = scmp.ne.s32.totalorder %s84, %s85
    %p94 = scmp.eq.s32.totalorder %s18, 0
    %p95 = por %p93, %p94
    %p96 = scmp.ne.s32.totalorder %s84, %s85
    %p97 = scmp.eq.s32.totalorder %s19, 1
    %p98 = por %p96, %p97
    %p100 = scmp.ne.s32.totalorder %s85, %s99
    %p101 = scmp.eq.s32.totalorder %s19, 0
    %p102 = por %p100, %p101
    %s104 = sadd.s32 %s103, 1
    %p107 = scmp.eq.s32.totalorder %s13, 1
    %p108 = scmp.ne.s32.totalorder %s103, %s105
    %p109 = scmp.eq.s32.totalorder %s13, 0
    %p110 = por %p108, %p109
    %p111 = scmp.ne.s32.totalorder %s103, %s105
    %p112 = scmp.eq.s32.totalorder %s18, 1
    %p113 = por %p111, %p112
    %p114 = scmp.ne.s32.totalorder %s105, %s106
    %p115 = scmp.eq.s32.totalorder %s18, 0
    %p116 = por %p114, %p115
    %p117 = scmp.ne.s32.totalorder %s105, %s106
    %p118 = scmp.eq.s32.totalorder %s19, 1
    %p119 = por %p117, %p118
    %p121 = scmp.ne.s32.totalorder %s106, %s120
    %p122 = scmp.eq.s32.totalorder %s19, 0
    %p123 = por %p121, %p122
    %s125 = sadd.s32 %s124, 1
    %p128 = scmp.eq.s32.totalorder %s13, 1
    %p129 = scmp.ne.s32.totalorder %s124, %s126
    %p130 = scmp.eq.s32.totalorder %s13, 0
    %p131 = por %p129, %p130
    %p132 = scmp.ne.s32.totalorder %s124, %s126
    %p133 = scmp.eq.s32.totalorder %s18, 1
    %p134 = por %p132, %p133
    %p135 = scmp.ne.s32.totalorder %s126, %s127
    %p136 = scmp.eq.s32.totalorder %s18, 0
    %p137 = por %p135, %p136
    %p138 = scmp.ne.s32.totalorder %s126, %s127
    %p139 = scmp.eq.s32.totalorder %s19, 1
    %p140 = por %p138, %p139
    %p142 = scmp.ne.s32.totalorder %s127, %s141
    %p143 = scmp.eq.s32.totalorder %s19, 0
    %p144 = por %p142, %p143
    %s145 = ssub.s32 %s20, %s32
    %s146 = ssub.s32 %s21, %s28
    %s147 = sor.u32 %s145, %s146
    %p148 = scmp.eq.s32.totalorder %s147, 0
    %s150 = sadd.s32 %s149, 1
    %s151 = scalar_select %p148, %s149, %s150
    %p154 = pneg %p148
    %p155 = scmp.eq.s32.totalorder %s13, 1
    %p156 = por %p154, %p155
    %p157 = scmp.ne.s32.totalorder %s149, %s152
    %p158 = scmp.eq.s32.totalorder %s13, 0
    %p159 = por %p157, %p158
    %p160 = scmp.ne.s32.totalorder %s149, %s152
    %p161 = scmp.eq.s32.totalorder %s18, 1
    %p162 = por %p160, %p161
    %p163 = scmp.ne.s32.totalorder %s152, %s153
    %p164 = scmp.eq.s32.totalorder %s18, 0
    %p165 = por %p163, %p164
    %p166 = scmp.ne.s32.totalorder %s152, %s153
    %p167 = scmp.eq.s32.totalorder %s19, 1
    %p168 = por %p166, %p167
    %p170 = scmp.ne.s32.totalorder %s153, %s169
    %p171 = scmp.eq.s32.totalorder %s19, 0
    %p172 = por %p170, %p171
    %s173 = ssub.s32 %s20, %s32
    %s174 = ssub.s32 %s21, %s28
    %s175 = sor.u32 %s173, %s174
    %p176 = scmp.eq.s32.totalorder %s175, 0
    %s178 = sadd.s32 %s177, 1
    %s179 = scalar_select %p176, %s177, %s178
    %p182 = pneg %p176
    %p183 = scmp.eq.s32.totalorder %s13, 1
    %p184 = por %p182, %p183
    %p185 = scmp.ne.s32.totalorder %s177, %s180
    %p186 = scmp.eq.s32.totalorder %s13, 0
    %p187 = por %p185, %p186
    %p188 = scmp.ne.s32.totalorder %s177, %s180
    %p189 = scmp.eq.s32.totalorder %s18, 1
    %p190 = por %p188, %p189
    %p191 = scmp.ne.s32.totalorder %s180, %s181
    %p192 = scmp.eq.s32.totalorder %s18, 0
    %p193 = por %p191, %p192
    %p194 = scmp.ne.s32.totalorder %s180, %s181
    %p195 = scmp.eq.s32.totalorder %s19, 1
    %p196 = por %p194, %p195
    %p198 = scmp.ne.s32.totalorder %s181, %s197
    %p199 = scmp.eq.s32.totalorder %s19, 0
    %p200 = por %p198, %p199
    %p201 = scmp.le.s32.totalorder 1, %s13
    %p202 = scmp.lt.s32.totalorder %s13, 3
    %p203 = pnand %p201, %p202
    %p204 = pneg %p203
    // Predicated region
    $region9: #{output_head.1} parent=5 // pred_check
      _
    $region10: #{output_head.1} parent=5 // pred_check_branch
      %206 = sbr.rel (%p203) target = $region12
    $region11: #{output_head.1} parent=5 // pred_region
      %s207 = ssub.s32 %s13, 1
      // Predicated region
      $region13: #{output_head.1} parent=11 // pred_check
        %p208 = pneg %p74
      $region14: #{output_head.1} parent=11 // pred_check_branch
        %210 = sbr.rel (%p208) target = $region16
      $region15: #{output_head.1} parent=11 // pred_region
        _
      $region16: #{output_head.1} parent=11 // pred_fallthru
        _
      // Predicated region
      $region17: #{output_head.1} parent=11 // pred_check
        %p211 = pneg %p95
      $region18: #{output_head.1} parent=11 // pred_check_branch
        %213 = sbr.rel (%p211) target = $region20
      $region19: #{output_head.1} parent=11 // pred_region
        _
      $region20: #{output_head.1} parent=11 // pred_fallthru
        _
      // Predicated region
      $region21: #{output_head.1} parent=11 // pred_check
        %p214 = pneg %p116
      $region22: #{output_head.1} parent=11 // pred_check_branch
        %216 = sbr.rel (%p214) target = $region24
      $region23: #{output_head.1} parent=11 // pred_region
        _
      $region24: #{output_head.1} parent=11 // pred_fallthru
        _
      // Predicated region
      $region25: #{output_head.1} parent=11 // pred_check
        %p217 = pneg %p137
      $region26: #{output_head.1} parent=11 // pred_check_branch
        %219 = sbr.rel (%p217) target = $region28
      $region27: #{output_head.1} parent=11 // pred_region
        _
      $region28: #{output_head.1} parent=11 // pred_fallthru
        _
    $region12: #{output_head.1} parent=5 // pred_fallthru
      _
    %p220 = scmp.lt.s32.totalorder %s13, 2
    // Predicated region
    $region29: #{output_head.1} parent=5 // pred_check
      %p221 = pneg %p220
    $region30: #{output_head.1} parent=5 // pred_check_branch
      %223 = sbr.rel (%p221) target = $region32
    $region31: #{output_head.1} parent=5 // pred_region
      // Predicated region
      $region33: #{output_head.1} parent=31 // pred_check
        %p224 = pneg %p47
      $region34: #{output_head.1} parent=31 // pred_check_branch
        %226 = sbr.rel (%p224) target = $region36
      $region35: #{output_head.1} parent=31 // pred_region
        %s227 = smul.u32 2, %s21
        %p228 = scmp.lt.s32.totalorder %s20, 1
        %s229 = scalar_select %p228, %s20, 1
        %p230 = scmp.lt.s32.totalorder %s227, 1
        %s231 = scalar_select %p230, %s227, 1
        %s232 = smul.addr %s229, 8
        %s233 = sadd.s32 %s231, %s232
        %s234 = smul.addr %s233, 8
        %s235 = scalar_lea.vmem %s0, %s234
        %s236 = smul.u32 2, %s21
      $region36: #{output_head.1} parent=31 // pred_fallthru
        _
    $region32: #{output_head.1} parent=5 // pred_fallthru
      _
    %p237 = scmp.le.s32.totalorder 1, %s13
    %p238 = scmp.lt.s32.totalorder %s13, 3
    %p239 = pnand %p237, %p238
    %p240 = pneg %p239
    // Predicated region
    $region37: #{output_head.1} parent=5 // pred_check
      _
    $region38: #{output_head.1} parent=5 // pred_check_branch
      %242 = sbr.rel (%p239) target = $region40
    $region39: #{output_head.1} parent=5 // pred_region
      %s243 = ssub.s32 %s13, 1
      %s244 = smul.u32 2, %s23
      %p245 = scmp.lt.s32.totalorder %s22, 1
      %s246 = scalar_select %p245, %s22, 1
      %p247 = scmp.lt.s32.totalorder %s244, 1
      %s248 = scalar_select %p247, %s244, 1
      %s249 = smul.addr %s246, 8
      %s250 = sadd.s32 %s248, %s249
      %s251 = smul.addr %s250, 8
      %s252 = scalar_lea.vmem %s0, %s251
      %p253 = pneg %p53
      %p254 = pneg %p50
      %p255 = pneg %p74
      %p256 = pneg %p71
      %p257 = pneg %p95
      %p258 = pneg %p92
      %p259 = pneg %p116
      %p260 = pneg %p113
      %p261 = pneg %p137
      %p262 = pneg %p134
      %p263 = pneg %p165
      %p264 = pneg %p162
      %s265 = smul.u32 2, %s23
      %p266 = scmp.lt.s32.totalorder %s22, 1
      %s267 = scalar_select %p266, %s22, 1
      %p268 = scmp.lt.s32.totalorder %s265, 1
      %s269 = scalar_select %p268, %s265, 1
      %s270 = smul.addr %s267, 2
      %s271 = sadd.s32 %s269, %s270
      %s272 = scalar_lea.vmem %s5, %s271
      %p273 = pneg %p193
      %p274 = pneg %p190
      %s275 = smul.u32 2, %s23
      %p276 = scmp.lt.s32.totalorder %s22, 1
      %s277 = scalar_select %p276, %s22, 1
      %p278 = scmp.lt.s32.totalorder %s275, 1
      %s279 = scalar_select %p278, %s275, 1
      %s280 = smul.addr %s277, 2
      %s281 = sadd.s32 %s279, %s280
      %s282 = smul.addr %s281, 8
      %s283 = scalar_lea.vmem %s6, %s282
      %s284 = smul.u32 2, %s23
      %p285 = scmp.lt.s32.totalorder %s22, 1
      %s286 = scalar_select %p285, %s22, 1
      %p287 = scmp.lt.s32.totalorder %s284, 1
      %s288 = scalar_select %p287, %s284, 1
      %s289 = smul.addr %s286, 8
      %s290 = sadd.s32 %s288, %s289
      %s291 = smul.addr %s290, 8
      %s292 = scalar_lea.vmem %s0, %s291
      %s293 = smul.u32 2, %s23
      %s294 = smul.u32 2, %s23
      %p295 = scmp.lt.s32.totalorder %s22, 1
      %s296 = scalar_select %p295, %s22, 1
      %p297 = scmp.lt.s32.totalorder %s294, 1
      %s298 = scalar_select %p297, %s294, 1
      %s299 = smul.addr %s296, 2
      %s300 = sadd.s32 %s298, %s299
      %s301 = scalar_lea.vmem %s5, %s300
      %s302 = smul.u32 2, %s23
      %s303 = smul.u32 2, %s23
      %p304 = scmp.lt.s32.totalorder %s22, 1
      %s305 = scalar_select %p304, %s22, 1
      %p306 = scmp.lt.s32.totalorder %s303, 1
      %s307 = scalar_select %p306, %s303, 1
      %s308 = smul.addr %s305, 2
      %s309 = sadd.s32 %s307, %s308
      %s310 = smul.addr %s309, 8
      %s311 = scalar_lea.vmem %s6, %s310
      %s312 = smul.u32 2, %s23
      %v313 = vld [vmem:[%s292] sm:$0xff]
      %v314 = vld [vmem:[%s292 + $0x8] sm:$0xff]
      %v315 = vld [vmem:[%s292 + $0x10] sm:$0xff]
      %v316 = vld [vmem:[%s292 + $0x18] sm:$0xff]
      %v317 = vld [vmem:[%s292 + $0x20] sm:$0xff]
      %v318 = vld [vmem:[%s292 + $0x28] sm:$0xff]
      %v319 = vld [vmem:[%s292 + $0x30] sm:$0xff]
      %v320 = vld [vmem:[%s292 + $0x38] sm:$0xff]
      %v321 = vld [vmem:[%s1] sm:$0x3f]
      %v322 = vld [vmem:[%s2] sm:$0x3f]
      %324 = vset.pattern.permute.xlu0 0
      %325 = vperm.xlu0 %324, %v322
      %v326 = vpop.permute.xlu0 %325
      %vm328 = vcmask 261120
      %v330 = vsel %vm328, %v321, 0
      %332 = vmatprep.subr.mxu0 %v314
      %333 = vmatpush1.msra.mxu0 %v313
      %334 = vmatprep.subr.mxu0 %v316
      %335 = vmatpush1.msra.mxu0 %v315
      %336 = vmatprep.subr.mxu0 %v318
      %337 = vmatpush1.msra.mxu0 %v317
      %338 = vmatprep.subr.mxu0 %v320
      %339 = vmatpush1.msra.mxu0 %v319
      %340 = vmatprep.subr.mxu0 0.0
      %341 = vmatpush1.msra.mxu0 0.0
      %342 = vmatprep.subr.mxu0 0.0
      %343 = vmatpush1.msra.mxu0 0.0
      %344 = vmatprep.subr.mxu0 0.0
      %345 = vmatpush1.msra.mxu0 0.0
      %346 = vmatprep.subr.mxu0 0.0
      %347 = vmatpush1.msra.mxu0 0.0
      %348 = vmatprep.subr.mxu0 0.0
      %349 = vmatpush1.msra.mxu0 0.0
      %350 = vmatprep.subr.mxu0 0.0
      %351 = vmatpush1.msra.mxu0 0.0
      %352 = vmatprep.subr.mxu0 0.0
      %353 = vmatpush1.msra.mxu0 0.0
      %354 = vmatprep.subr.mxu0 0.0
      %355 = vmatpush1.msra.mxu0 0.0
      %356 = vmatprep.subr.mxu0 0.0
      %357 = vmatpush1.msra.mxu0 0.0
      %358 = vmatprep.subr.mxu0 0.0
      %359 = vmatpush1.msra.mxu0 0.0
      %360 = vmatprep.subr.mxu0 0.0
      %361 = vmatpush1.msra.mxu0 0.0
      %362 = vmatprep.subr.mxu0 0.0
      %363 = vmatpush1.msra.mxu0 0.0
      %364 = vmatprep.subr.mxu0 0.0
      %365 = vmatpush1.msra.mxu0 0.0
      %366 = vmatprep.subr.mxu0 0.0
      %367 = vmatpush1.msra.mxu0 0.0
      %368 = vmatprep.subr.mxu0 0.0
      %369 = vmatpush1.msra.mxu0 0.0
      %370 = vmatprep.subr.mxu0 0.0
      %371 = vmatpush1.msra.mxu0 0.0
      %372 = vmatprep.subr.mxu0 0.0
      %373 = vmatpush1.msra.mxu0 0.0
      %374 = vmatprep.subr.mxu0 0.0
      %375 = vmatpush1.msra.mxu0 0.0
      %376 = vmatprep.subr.mxu0 0.0
      %377 = vmatpush1.msra.mxu0 0.0
      %378 = vmatprep.subr.mxu0 0.0
      %379 = vmatpush1.msra.mxu0 0.0
      %380 = vmatprep.subr.mxu0 0.0
      %381 = vmatpush1.msra.mxu0 0.0
      %382 = vmatprep.subr.mxu0 0.0
      %383 = vmatpush1.msra.mxu0 0.0
      %384 = vmatprep.subr.mxu0 0.0
      %385 = vmatpush1.msra.mxu0 0.0
      %386 = vmatprep.subr.mxu0 0.0
      %387 = vmatpush1.msra.mxu0 0.0
      %388 = vmatprep.subr.mxu0 0.0
      %389 = vmatpush1.msra.mxu0 0.0
      %390 = vmatprep.subr.mxu0 0.0
      %391 = vmatpush1.msra.mxu0 0.0
      %392 = vmatprep.subr.mxu0 0.0
      %393 = vmatpush1.msra.mxu0 0.0
      %394 = vmatprep.subr.mxu0 0.0
      %395 = vmatpush1.msra.mxu0 0.0
      %396 = vmatprep.mubr.f32.mxu0 0.0
      %397 = vmatmul.mubr.f32.gmra.mrb[0].mxu0 %v330
      %v398 = vpop.f32.mrb[0].mxu0
      %v399 = vadd.f32 %v326, %v398
      %v400 = vpop.f32.mrb[0].mxu0
      %v401 = vadd.f32 %v326, %v400
      %402 = vdwg.mxu0
      %v403 = vxor.u32 %v399, 2147483648
      %v404 = vxor.u32 %v401, 2147483648
      %v405 = vmul.f32 %v403, 1.442695
      %v406 = vpow.pop %v405
      %v407 = vmul.f32 %v404, 1.442695
      %v408 = vpow.pop %v407
      %v409 = vadd.f32 %v406, 1.0
      %v410 = vadd.f32 %v408, 1.0
      %v411 = vrcp.pop %v409
      %v412 = vmul.f32 1.0, %v411
      %v413 = vrcp.pop %v410
      %v414 = vmul.f32 1.0, %v413
      %v415 = vld [vmem:[%s3] sm:$0x3f]
      %417 = vset.pattern.permute.xlu0 0
      %418 = vperm.xlu0 %417, %v415
      %v419 = vpop.permute.xlu0 %418
      %v421 = vmul.f32 %v412, %v419
      %v422 = vmul.f32 %v414, %v419
      %v423 = vld [vmem:[%s4] sm:$0x3f]
      %425 = vset.pattern.permute.xlu0 0
      %426 = vperm.xlu0 %425, %v423
      %v427 = vpop.permute.xlu0 %426
      %v429 = vadd.f32 %v421, %v427
      %v430 = vadd.f32 %v422, %v427
      %v433 = vcombine.low %v429, %v430
      %v435 = vunpack.c.l.s4 1966171168
      %v436 = vunpack.c.0.s8 %v435
      %v437 = vlaneseq
      %v438 = vshrl.u32 %v437, 7
      %v439 = vsub.s32 %v436, %v438
      %v440 = vrot.slane %v433, %v439
      %v442 = vunpack.c.l.s4 1966171168
      %v443 = vunpack.c.0.s8 %v442
      %v444 = vlaneseq
      %v445 = vshrl.u32 %v444, 7
      %v446 = vsub.s32 %v443, %v445
      %v447 = vrot.slane %v440, %v446
      %v449 = vlaneseq
      %vm450 = vcmp.ge.s32.totalorder %v449, 0
      %vm451 = vcmp.lt.s32.totalorder %v449, 256
      %vm452 = vmand %vm450, %vm451
      %453 = vst.msk [vmem:[%s301] sm:$0x3] %vm452, %v447
      %v454 = vrot.slane %v429, 1
      %v455 = vrot.slane %v430, 1
      %458 = vst [vmem:[%s311] sm:$0x1f] %v454
      %459 = vst [vmem:[%s311 + $0x8] sm:$0x1f] %v455
      %s460 = smul.u32 2, %s23
      %p461 = scmp.lt.s32.totalorder %s22, 1
      %s462 = scalar_select %p461, %s22, 1
      %p463 = scmp.lt.s32.totalorder %s460, 1
      %s464 = scalar_select %p463, %s460, 1
      %s465 = smul.addr %s462, 2
      %s466 = sadd.s32 %s464, %s465
      %s467 = scalar_lea.vmem %s5, %s466
      %s468 = smul.u32 2, %s23
      %p469 = scmp.lt.s32.totalorder %s22, 1
      %s470 = scalar_select %p469, %s22, 1
      %p471 = scmp.lt.s32.totalorder %s468, 1
      %s472 = scalar_select %p471, %s468, 1
      %s473 = smul.addr %s470, 2
      %s474 = sadd.s32 %s472, %s473
      %s475 = smul.addr %s474, 8
      %s476 = scalar_lea.vmem %s6, %s475
      // Predicated region
      $region41: #{output_head.1} parent=39 // pred_check
        %p477 = pneg %p162
      $region42: #{output_head.1} parent=39 // pred_check_branch
        %479 = sbr.rel (%p477) target = $region44
      $region43: #{output_head.1} parent=39 // pred_region
        %s480 = smul.u32 2, %s23
      $region44: #{output_head.1} parent=39 // pred_fallthru
        _
      // Predicated region
      $region45: #{output_head.1} parent=39 // pred_check
        %p481 = pneg %p190
      $region46: #{output_head.1} parent=39 // pred_check_branch
        %483 = sbr.rel (%p481) target = $region48
      $region47: #{output_head.1} parent=39 // pred_region
        %s484 = smul.u32 2, %s23
      $region48: #{output_head.1} parent=39 // pred_fallthru
        _
    $region40: #{output_head.1} parent=5 // pred_fallthru
      _
    %p485 = scmp.le.s32.totalorder 2, %s13
    // Predicated region
    $region49: #{output_head.1} parent=5 // pred_check
      %p486 = pneg %p485
    $region50: #{output_head.1} parent=5 // pred_check_branch
      %488 = sbr.rel (%p486) target = $region52
    $region51: #{output_head.1} parent=5 // pred_region
      %s489 = ssub.s32 %s13, 2
      // Predicated region
      $region53: #{output_head.1} parent=51 // pred_check
        %p490 = pneg %p168
      $region54: #{output_head.1} parent=51 // pred_check_branch
        %492 = sbr.rel (%p490) target = $region56
      $region55: #{output_head.1} parent=51 // pred_region
        %s493 = smul.u32 2, %s25
        %p494 = scmp.lt.s32.totalorder %s24, 1
        %s495 = scalar_select %p494, %s24, 1
        %p496 = scmp.lt.s32.totalorder %s493, 1
        %s497 = scalar_select %p496, %s493, 1
        %s498 = smul.addr %s495, 2
        %s499 = sadd.s32 %s497, %s498
        %s500 = scalar_lea.vmem %s5, %s499
      $region56: #{output_head.1} parent=51 // pred_fallthru
        _
      // Predicated region
      $region57: #{output_head.1} parent=51 // pred_check
        %p501 = pneg %p196
      $region58: #{output_head.1} parent=51 // pred_check_branch
        %503 = sbr.rel (%p501) target = $region60
      $region59: #{output_head.1} parent=51 // pred_region
        %s504 = smul.u32 2, %s25
        %p505 = scmp.lt.s32.totalorder %s24, 1
        %s506 = scalar_select %p505, %s24, 1
        %p507 = scmp.lt.s32.totalorder %s504, 1
        %s508 = scalar_select %p507, %s504, 1
        %s509 = smul.addr %s506, 2
        %s510 = sadd.s32 %s508, %s509
        %s511 = smul.addr %s510, 8
        %s512 = scalar_lea.vmem %s6, %s511
      $region60: #{output_head.1} parent=51 // pred_fallthru
        _
    $region52: #{output_head.1} parent=5 // pred_fallthru
      _
  $region6: #{output_head.1} parent=0 // loop_footer
    %s17 = sadd.s32 1, %s13
  $region7: #{output_head.1} parent=0 // loop_footer_branch
    %12 = sbr.rel target = $region3
  $region8: #{output_head.1} parent=0 // loop_exit
    _

</llo_original>
